<compile_context>
chip_gen: v6e
topology: v6e:2x2x1
jax: 0.10.0
libtpu: 0.0.40
codegen_flags: <defaults>
</compile_context>

<pallas_src>
import functools

import jax
import jax.numpy as jnp
from jax.experimental import pallas as pl
from jax.experimental.pallas import tpu as pltpu


# ----------------------------------------------------------------------------
# Pallas kernel: streamed contrastive loss over lane-dense edge tiles
# ----------------------------------------------------------------------------
def _cl_loss_kernel(u_ref, p_ref, n_ref, o_ref, acc_ref, *, num_edges,
                    groups_per_tile, temperature):
    # u_ref / p_ref / n_ref : [TG, 128, D]   (128 edges per group, D on lanes)
    # o_ref                 : [1, 1]         final scalar sum (written once)
    # acc_ref               : [TG, 128] f32  lane-dense running accumulator
    t = pl.program_id(0)

    @pl.when(t == 0)
    def _():
        acc_ref[...] = jnp.zeros_like(acc_ref)

    u = u_ref[...].astype(jnp.float32)
    d = p_ref[...].astype(jnp.float32) - n_ref[...].astype(jnp.float32)

    inv_t = jnp.float32(1.0 / temperature)
    # Per-edge fused score difference: one reduce over D, lane-dense result.
    diff = jnp.sum(u * d, axis=-1) * inv_t                      # (TG, 128)

    # Stable log2(sigmoid(diff)) = (min(diff,0) - log(1 + exp(-|diff|))) / ln 2
    log_sig = jnp.minimum(diff, 0.0) - jnp.log(1.0 + jnp.exp(-jnp.abs(diff)))
    log2_sig = log_sig * jnp.float32(1.4426950408889634)        # 1 / ln(2)

    # Mask padded edges (global edge index >= num_edges).
    row = jax.lax.broadcasted_iota(jnp.int32, diff.shape, 0)
    col = jax.lax.broadcasted_iota(jnp.int32, diff.shape, 1)
    edge_idx = (t * groups_per_tile + row) * 128 + col
    valid = edge_idx < num_edges

    # Deferred reduction: pure VPU add into the lane-wide accumulator.
    acc_ref[...] = acc_ref[...] + jnp.where(valid, log2_sig, 0.0)

    @pl.when(t == pl.num_programs(0) - 1)
    def _():
        o_ref[...] = jnp.sum(acc_ref[...], keepdims=True)       # (1, 1)


# ----------------------------------------------------------------------------
# Generation-aware tiling plan
# ----------------------------------------------------------------------------
def _vmem_capacity_bytes():
    try:
        return int(pltpu.get_tpu_info().vmem_capacity_bytes)
    except Exception:
        return 64 * 1024 * 1024   # conservative (v7x-sized) fallback


def _plan_tiling(num_edges, dim_latent, *, max_lane_tile=None):
    """Returns (n_tiles, lane_tile TE, padded edge count, vmem_limit_bytes)."""
    cap = _vmem_capacity_bytes()
    # Budget for the 3 double-buffered input tiles (leave room for the rest).
    tile_budget = min(cap // 3, 48 * 1024 * 1024)
    d_pad = -(-dim_latent // 128) * 128              # VMEM lane padding of D
    bytes_per_edge = 3 * 2 * d_pad * 4               # 3 inputs x 2 buffers x f32
    te = (tile_budget // bytes_per_edge) // 128 * 128
    te = int(min(max(te, 512), 8192))
    if max_lane_tile is not None:
        te = max(128, (min(te, int(max_lane_tile)) // 128) * 128)

    e_pad128 = -(-num_edges // 128) * 128
    te = min(te, e_pad128)
    n_tiles = -(-e_pad128 // te)
    e_pad = n_tiles * te

    vmem_limit = min(cap * 3 // 4, 112 * 1024 * 1024)
    return n_tiles, te, e_pad, vmem_limit


def contrastive_loss_pallas(user_g, pos_g, neg_g, *, num_edges, n_tiles,
                            lane_tile, vmem_limit, temperature):
    """user_g / pos_g / neg_g: [E_pad//128, 128, D] gathered embeddings."""
    _, _, dim = user_g.shape
    tg = lane_tile // 128
    kernel = functools.partial(
        _cl_loss_kernel, num_edges=num_edges, groups_per_tile=tg,
        temperature=float(temperature))

    in_spec = pl.BlockSpec((tg, 128, dim), lambda t: (t, 0, 0))
    total = pl.pallas_call(
        kernel,
        out_shape=jax.ShapeDtypeStruct((1, 1), jnp.float32),
        grid=(n_tiles,),
        in_specs=[in_spec, in_spec, in_spec],
        out_specs=pl.BlockSpec((1, 1), lambda t: (0, 0)),
        scratch_shapes=[pltpu.VMEM((tg, 128), jnp.float32)],
        compiler_params=pltpu.CompilerParams(
            dimension_semantics=("arbitrary",),
            vmem_limit_bytes=int(vmem_limit),
        ),
    )(user_g, pos_g, neg_g)
    # loss = -mean(log2(sigmoid(pos - neg)))
    return -total[0, 0] / num_edges


# ----------------------------------------------------------------------------
# Module-equivalent wrapper (negative sampling + gathers are plain-JAX glue)
# ----------------------------------------------------------------------------
def sample_negative_items(key, pos_item_nodes, num_items):
    """Collision-free uniform negatives: pos + U[1, num_items) mod num_items.

    Same per-element marginal (uniform over items != pos) as the torch rejection
    loop, but guaranteed to terminate. Requires num_items >= 2.
    """
    num_edges = pos_item_nodes.shape[0]
    off = jax.random.randint(key, (num_edges,), 1, num_items, dtype=jnp.int32)
    return (pos_item_nodes.astype(jnp.int32) + off) % num_items


def contrastive_learning_forward(user_rep, item_rep, edge_index, key,
                                 temperature=0.1, max_lane_tile=None,
                                 stream_dtype=None):
    user_nodes = edge_index[0].astype(jnp.int32)
    pos_item_nodes = edge_index[1].astype(jnp.int32)
    num_edges = int(user_nodes.shape[0])
    if num_edges == 0:
        return jnp.float32(0.0)

    neg_item_nodes = sample_negative_items(key, pos_item_nodes, item_rep.shape[0])

    dim_latent = int(user_rep.shape[1])
    n_tiles, lane_tile, e_pad, vmem_limit = _plan_tiling(
        num_edges, dim_latent, max_lane_tile=max_lane_tile)

    pad = e_pad - num_edges
    if pad:
        user_nodes = jnp.pad(user_nodes, (0, pad))
        pos_item_nodes = jnp.pad(pos_item_nodes, (0, pad))
        neg_item_nodes = jnp.pad(neg_item_nodes, (0, pad))

    # Natural row gathers, no transpose pass. Reshape is free (contiguous).
    # stream_dtype=jnp.bfloat16 halves HBM traffic (kernel upcasts to f32);
    # default f32 keeps bit-for-bit parity with the reference.
    def _gather(rep, idx):
        g = jnp.take(rep, idx, axis=0)
        if stream_dtype is not None:
            g = g.astype(stream_dtype)
        return g.reshape(e_pad // 128, 128, dim_latent)

    user_g = _gather(user_rep, user_nodes)
    pos_g = _gather(item_rep, pos_item_nodes)
    neg_g = _gather(item_rep, neg_item_nodes)

    return contrastive_loss_pallas(user_g, pos_g, neg_g, num_edges=num_edges,
                                   n_tiles=n_tiles, lane_tile=lane_tile,
                                   vmem_limit=vmem_limit, temperature=temperature)


# ----------------------------------------------------------------------------
# Pure-JAX reference for verification (same sampling, stable log-sigmoid)
# ----------------------------------------------------------------------------
def _reference_loss(user_rep, item_rep, edge_index, key, temperature):
    user_nodes, pos_nodes = edge_index[0], edge_index[1]
    neg_nodes = sample_negative_items(key, pos_nodes, item_rep.shape[0])
    ut = jnp.take(user_rep, user_nodes, axis=0)
    pt = jnp.take(item_rep, pos_nodes, axis=0)
    nt = jnp.take(item_rep, neg_nodes, axis=0)
    diff = (jnp.sum(ut * pt, axis=1) - jnp.sum(ut * nt, axis=1)) / temperature
    return -jnp.mean(jax.nn.log_sigmoid(diff) / jnp.log(2.0))


if __name__ == "__main__":
    key = jax.random.PRNGKey(0)
    temperature = 0.1

    def _make_case(subkey, num_users, num_items, dim_latent, num_edges):
        k_user, k_item, k_edges = jax.random.split(subkey, 3)
        user_rep = 0.3 * jax.random.normal(k_user, (num_users, dim_latent), jnp.float32)
        item_rep = 0.3 * jax.random.normal(k_item, (num_items, dim_latent), jnp.float32)
        edge_index = jnp.stack([
            jax.random.randint(k_edges, (num_edges,), 0, num_users, dtype=jnp.int32),
            jax.random.randint(jax.random.fold_in(k_edges, 1), (num_edges,), 0,
                               num_items, dtype=jnp.int32),
        ], axis=0)
        return user_rep, item_rep, edge_index

    # --- test 1: small shapes, single tile --------------------------------
    k1, k1n = jax.random.split(jax.random.fold_in(key, 1))
    u1, i1, e1 = _make_case(k1, 8, 16, 32, 16)
    loss1 = jax.block_until_ready(
        contrastive_learning_forward(u1, i1, e1, k1n, temperature=temperature))
    ref1 = _reference_loss(u1, i1, e1, k1n, temperature)
    assert jnp.allclose(loss1, ref1, rtol=1e-4, atol=1e-4), (loss1, ref1)

    # --- test 2: multi-tile path (forced small lane tile) + masking --------
    k2, k2n = jax.random.split(jax.random.fold_in(key, 2))
    u2, i2, e2 = _make_case(k2, 50, 300, 64, 1200)
    loss2 = jax.block_until_ready(
        contrastive_learning_forward(u2, i2, e2, k2n, temperature=temperature,
                                     max_lane_tile=512))
    ref2 = _reference_loss(u2, i2, e2, k2n, temperature)
    assert jnp.allclose(loss2, ref2, rtol=1e-4, atol=1e-4), (loss2, ref2)

    # --- test 3: default (auto-sized) tiling path ---------------------------
    k3, k3n = jax.random.split(jax.random.fold_in(key, 3))
    u3, i3, e3 = _make_case(k3, 40, 200, 64, 1200)
    loss3 = jax.block_until_ready(
        contrastive_learning_forward(u3, i3, e3, k3n, temperature=temperature))
    ref3 = _reference_loss(u3, i3, e3, k3n, temperature)
    assert jnp.allclose(loss3, ref3, rtol=1e-4, atol=1e-4), (loss3, ref3)

    print("KERNEL_OK")
</pallas_src>

<mosaic_0001>
module attributes {stable_mosaic.version = 11 : i64} {
  func.func @_cl_loss_kernel(%arg0: i32, %arg1: memref<1x128x32xf32, #tpu.memory_space<vmem>>, %arg2: memref<1x128x32xf32, #tpu.memory_space<vmem>>, %arg3: memref<1x128x32xf32, #tpu.memory_space<vmem>>, %arg4: memref<1x1xf32, #tpu.memory_space<vmem>>, %arg5: memref<1x128xf32, #tpu.memory_space<vmem>>) attributes {dimension_semantics = [#tpu.dimension_semantics<arbitrary>], iteration_bounds = array<i64: 1>, scalar_prefetch = 0 : i64, scratch_operands = 1 : i64, tpu.core_type = #tpu.core_type<tc>, window_params = [{transform_indices = @transform_0, window_bounds = array<i64: 1, 128, 32>}, {transform_indices = @transform_1, window_bounds = array<i64: 1, 128, 32>}, {transform_indices = @transform_2, window_bounds = array<i64: 1, 128, 32>}, {pipeline_mode = #tpu.pipeline_mode<synchronous>, transform_indices = @transform_3, window_bounds = array<i64: 1, 1>}]} {
    %c0_i32 = arith.constant 0 : i32
    %0 = arith.cmpi eq, %arg0, %c0_i32 : i32
    %1 = arith.extui %0 : i1 to i32
    %c0_i32_0 = arith.constant 0 : i32
    %2 = arith.cmpi ne, %1, %c0_i32_0 : i32
    scf.if %2 {
      %cst_21 = arith.constant 0.000000e+00 : f32
      %41 = vector.broadcast %cst_21 : f32 to vector<1x128xf32>
      %c0_22 = arith.constant 0 : index
      %c0_23 = arith.constant 0 : index
      %42 = vector.load %arg5[%c0_22, %c0_23] : memref<1x128xf32, #tpu.memory_space<vmem>>, vector<1x128xf32>
      tpu.vector_store %arg5[%c0_22, %c0_23], %41 {strides = array<i32>} : memref<1x128xf32, #tpu.memory_space<vmem>>, vector<1x128xf32>,
    } else {
    }
    %c0 = arith.constant 0 : index
    %c0_1 = arith.constant 0 : index
    %c0_2 = arith.constant 0 : index
    %3 = vector.load %arg1[%c0, %c0_1, %c0_2] : memref<1x128x32xf32, #tpu.memory_space<vmem>>, vector<1x128x32xf32>
    %c0_3 = arith.constant 0 : index
    %c0_4 = arith.constant 0 : index
    %c0_5 = arith.constant 0 : index
    %4 = vector.load %arg2[%c0_3, %c0_4, %c0_5] : memref<1x128x32xf32, #tpu.memory_space<vmem>>, vector<1x128x32xf32>
    %c0_6 = arith.constant 0 : index
    %c0_7 = arith.constant 0 : index
    %c0_8 = arith.constant 0 : index
    %5 = vector.load %arg3[%c0_6, %c0_7, %c0_8] : memref<1x128x32xf32, #tpu.memory_space<vmem>>, vector<1x128x32xf32>
    %6 = arith.subf %4, %5 : vector<1x128x32xf32>
    %7 = arith.mulf %3, %6 : vector<1x128x32xf32>
    %cst = arith.constant dense<0.000000e+00> : vector<1x128xf32>
    %8 = vector.multi_reduction <add>, %7, %cst [2] : vector<1x128x32xf32> to vector<1x128xf32>
    %cst_9 = arith.constant 1.000000e+01 : f32
    %9 = vector.broadcast %cst_9 : f32 to vector<1x128xf32>
    %10 = arith.mulf %8, %9 : vector<1x128xf32>
    %cst_10 = arith.constant 0.000000e+00 : f32
    %11 = vector.broadcast %cst_10 : f32 to vector<1x128xf32>
    %12 = arith.minimumf %10, %11 : vector<1x128xf32>
    %13 = math.absf %10 : vector<1x128xf32>
    %cst_11 = arith.constant 0.000000e+00 : f32
    %14 = vector.broadcast %cst_11 : f32 to vector<1x128xf32>
    %15 = arith.subf %14, %13 : vector<1x128xf32>
    %16 = math.exp %15 : vector<1x128xf32>
    %cst_12 = arith.constant 1.000000e+00 : f32
    %17 = vector.broadcast %cst_12 : f32 to vector<1x128xf32>
    %18 = arith.addf %17, %16 : vector<1x128xf32>
    %19 = math.log %18 : vector<1x128xf32>
    %20 = arith.subf %12, %19 : vector<1x128xf32>
    %cst_13 = arith.constant 1.44269502 : f32
    %21 = vector.broadcast %cst_13 : f32 to vector<1x128xf32>
    %22 = arith.mulf %20, %21 : vector<1x128xf32>
    %23 = tpu.iota {dimensions = array<i32: 0>} : vector<1x128xi32>
    %24 = tpu.iota {dimensions = array<i32: 1>} : vector<1x128xi32>
    %c1_i32 = arith.constant 1 : i32
    %25 = arith.muli %arg0, %c1_i32 : i32
    %26 = vector.broadcast %25 : i32 to vector<1x128xi32>
    %27 = arith.addi %26, %23 : vector<1x128xi32>
    %c128_i32 = arith.constant 128 : i32
    %28 = vector.broadcast %c128_i32 : i32 to vector<1x128xi32>
    %29 = arith.muli %27, %28 : vector<1x128xi32>
    %30 = arith.addi %29, %24 : vector<1x128xi32>
    %c16_i32 = arith.constant 16 : i32
    %31 = vector.broadcast %c16_i32 : i32 to vector<1x128xi32>
    %32 = arith.cmpi slt, %30, %31 : vector<1x128xi32>
    %c0_14 = arith.constant 0 : index
    %c0_15 = arith.constant 0 : index
    %33 = vector.load %arg5[%c0_14, %c0_15] : memref<1x128xf32, #tpu.memory_space<vmem>>, vector<1x128xf32>
    %cst_16 = arith.constant 0.000000e+00 : f32
    %34 = vector.broadcast %cst_16 : f32 to vector<1x128xf32>
    %35 = arith.select %32, %22, %34 : vector<1x128xi1>, vector<1x128xf32>
    %36 = arith.addf %33, %35 : vector<1x128xf32>
    %c0_17 = arith.constant 0 : index
    %c0_18 = arith.constant 0 : index
    %37 = vector.load %arg5[%c0_17, %c0_18] : memref<1x128xf32, #tpu.memory_space<vmem>>, vector<1x128xf32>
    tpu.vector_store %arg5[%c0_17, %c0_18], %36 {strides = array<i32>} : memref<1x128xf32, #tpu.memory_space<vmem>>, vector<1x128xf32>,
    %c0_i32_19 = arith.constant 0 : i32
    %38 = arith.cmpi eq, %arg0, %c0_i32_19 : i32
    %39 = arith.extui %38 : i1 to i32
    %c0_i32_20 = arith.constant 0 : i32
    %40 = arith.cmpi ne, %39, %c0_i32_20 : i32
    scf.if %40 {
      %c0_21 = arith.constant 0 : index
      %c0_22 = arith.constant 0 : index
      %41 = vector.load %arg5[%c0_21, %c0_22] : memref<1x128xf32, #tpu.memory_space<vmem>>, vector<1x128xf32>
      %42 = vector.shape_cast %41 : vector<1x128xf32> to vector<1x1x128xf32>
      %cst_23 = arith.constant dense<0.000000e+00> : vector<1xf32>
      %43 = vector.multi_reduction <add>, %42, %cst_23 [1, 2] : vector<1x1x128xf32> to vector<1xf32>
      %44 = vector.shape_cast %43 : vector<1xf32> to vector<1x1x1xf32>
      %45 = vector.extract %44[0, 0, 0] : f32 from vector<1x1x1xf32>
      %46 = vector.broadcast %45 : f32 to vector<1x1xf32>
      %c0_24 = arith.constant 0 : index
      %c0_25 = arith.constant 0 : index
      %47 = vector.load %arg4[%c0_24, %c0_25] : memref<1x1xf32, #tpu.memory_space<vmem>>, vector<1x1xf32>
      tpu.vector_store %arg4[%c0_24, %c0_25], %46 {strides = array<i32>} : memref<1x1xf32, #tpu.memory_space<vmem>>, vector<1x1xf32>,
    } else {
    }
    return
  }
  func.func @transform_0(%arg0: i32) -> (i32, i32, i32) {
    %c0_i32 = arith.constant 0 : i32
    %c0_i32_0 = arith.constant 0 : i32
    %c0_i32_1 = arith.constant 0 : i32
    return %arg0, %c0_i32, %c0_i32_0 : i32, i32, i32
  }
  func.func @transform_1(%arg0: i32) -> (i32, i32, i32) {
    %c0_i32 = arith.constant 0 : i32
    %c0_i32_0 = arith.constant 0 : i32
    %c0_i32_1 = arith.constant 0 : i32
    return %arg0, %c0_i32, %c0_i32_0 : i32, i32, i32
  }
  func.func @transform_2(%arg0: i32) -> (i32, i32, i32) {
    %c0_i32 = arith.constant 0 : i32
    %c0_i32_0 = arith.constant 0 : i32
    %c0_i32_1 = arith.constant 0 : i32
    return %arg0, %c0_i32, %c0_i32_0 : i32, i32, i32
  }
  func.func @transform_3(%arg0: i32) -> (i32, i32) {
    %c0_i32 = arith.constant 0 : i32
    %c0_i32_0 = arith.constant 0 : i32
    %c0_i32_1 = arith.constant 0 : i32
    return %c0_i32, %c0_i32_0 : i32, i32
  }
}

</mosaic_0001>

<llo_original>
// kernel: tpu_custom_call.1
$region0: #{tpu_custom_call.1}
  #allocation0 [shape = 'u32[]', space=smem, size = 0x4, offset = 0x4, fixed_abs, tag = 'smem constant byte address 0x4 - core index']
  #allocation1 [shape = 'u32[144,128]{1,0:T(1,128)}', space=vmem, size = 0x12000, scoped, tag = 'internal scratch']
  #allocation2 [shape = 'f32[1,128]{1,0:T(1,128)}', space=vmem, size = 0x200, scoped, tag = 'scratch operand']
  %s0 = inlined_call_operand.vmem [shape: f32[1,128,32], index: 0, kind: input, shape index: {}]
  %s1 = inlined_call_operand.vmem [shape: f32[1,128,32], index: 1, kind: input, shape index: {}]
  %s2 = inlined_call_operand.vmem [shape: f32[1,128,32], index: 2, kind: input, shape index: {}]
  %s3 = inlined_call_operand.hbm [shape: f32[1,1], index: 3, kind: output, shape index: {}]
  %s4 = sld [smem:[#allocation0]]
  $region30: #{tpu_custom_call.1} parent=0
    _
  %s6 = ssub.s32 1, %s4
  %s7 = scalar_select 0, %s6, %s4
  $region1: #{tpu_custom_call.1} parent=0
    #allocation3 [shape = 'u8[512]{0}', space=vmem, size = 0x400, scoped, tag = 'output window, operand 0, single buffered']
    #allocation4 [shape = 's32[1]{0}', space=sflag, size = 0x4, scoped, tag = 'scoped memory for tpu_custom_call.1']
    %8 = vsyncpa [#allocation4], 0
    // Predicated region
    $region2: #{tpu_custom_call.1} parent=1 // pred_check
      _
    $region3: #{tpu_custom_call.1} parent=1 // pred_check_branch
      %10 = sbr.rel (0) target = $region5
    $region4: #{tpu_custom_call.1} parent=1 // pred_region
      _
    $region5: #{tpu_custom_call.1} parent=1 // pred_fallthru
      _
    // Predicated region
    $region6: #{tpu_custom_call.1} parent=1 // pred_check
      _
    $region7: #{tpu_custom_call.1} parent=1 // pred_check_branch
      %12 = sbr.rel (0) target = $region9
    $region8: #{tpu_custom_call.1} parent=1 // pred_region
      _
    $region9: #{tpu_custom_call.1} parent=1 // pred_fallthru
      _
    // Predicated region
    $region10: #{tpu_custom_call.1} parent=1 // pred_check
      _
    $region11: #{tpu_custom_call.1} parent=1 // pred_check_branch
      %14 = sbr.rel (0) target = $region13
    $region12: #{tpu_custom_call.1} parent=1 // pred_region
      _
    $region13: #{tpu_custom_call.1} parent=1 // pred_fallthru
      _
    %p15 = scmp.eq.s32.totalorder 0, 0
    // Predicated region
    $region14: #{tpu_custom_call.1} parent=1 // pred_check
      %p16 = pneg %p15
    $region15: #{tpu_custom_call.1} parent=1 // pred_check_branch
      %18 = sbr.rel (%p16) target = $region17
    $region16: #{tpu_custom_call.1} parent=1 // pred_region
      %19 = vst [vmem:[#allocation2] sm:$0x1] 0.0
    $region17: #{tpu_custom_call.1} parent=1 // pred_fallthru
      _
    %v20 = vld [vmem:[%s0] sm:$0xff]
    %v21 = vld [vmem:[%s0 + $0x8] sm:$0xff]
    %v22 = vld [vmem:[%s0 + $0x10] sm:$0xff]
    %v23 = vld [vmem:[%s0 + $0x18] sm:$0xff]
    %v24 = vld [vmem:[%s0 + $0x20] sm:$0xff]
    %v25 = vld [vmem:[%s0 + $0x28] sm:$0xff]
    %v26 = vld [vmem:[%s0 + $0x30] sm:$0xff]
    %v27 = vld [vmem:[%s0 + $0x38] sm:$0xff]
    %v28 = vld [vmem:[%s0 + $0x40] sm:$0xff]
    %v29 = vld [vmem:[%s0 + $0x48] sm:$0xff]
    %v30 = vld [vmem:[%s0 + $0x50] sm:$0xff]
    %v31 = vld [vmem:[%s0 + $0x58] sm:$0xff]
    %v32 = vld [vmem:[%s0 + $0x60] sm:$0xff]
    %v33 = vld [vmem:[%s0 + $0x68] sm:$0xff]
    %v34 = vld [vmem:[%s0 + $0x70] sm:$0xff]
    %v35 = vld [vmem:[%s0 + $0x78] sm:$0xff]
    %v36 = vld [vmem:[%s1] sm:$0xff]
    %v37 = vld [vmem:[%s1 + $0x8] sm:$0xff]
    %v38 = vld [vmem:[%s1 + $0x10] sm:$0xff]
    %v39 = vld [vmem:[%s1 + $0x18] sm:$0xff]
    %v40 = vld [vmem:[%s1 + $0x20] sm:$0xff]
    %v41 = vld [vmem:[%s1 + $0x28] sm:$0xff]
    %v42 = vld [vmem:[%s1 + $0x30] sm:$0xff]
    %v43 = vld [vmem:[%s1 + $0x38] sm:$0xff]
    %v44 = vld [vmem:[%s1 + $0x40] sm:$0xff]
    %v45 = vld [vmem:[%s1 + $0x48] sm:$0xff]
    %v46 = vld [vmem:[%s1 + $0x50] sm:$0xff]
    %v47 = vld [vmem:[%s1 + $0x58] sm:$0xff]
    %v48 = vld [vmem:[%s1 + $0x60] sm:$0xff]
    %v49 = vld [vmem:[%s1 + $0x68] sm:$0xff]
    %v50 = vld [vmem:[%s1 + $0x70] sm:$0xff]
    %v51 = vld [vmem:[%s1 + $0x78] sm:$0xff]
    %v52 = vld [vmem:[%s2] sm:$0xff]
    %v53 = vld [vmem:[%s2 + $0x8] sm:$0xff]
    %v54 = vld [vmem:[%s2 + $0x10] sm:$0xff]
    %v55 = vld [vmem:[%s2 + $0x18] sm:$0xff]
    %v56 = vld [vmem:[%s2 + $0x20] sm:$0xff]
    %v57 = vld [vmem:[%s2 + $0x28] sm:$0xff]
    %v58 = vld [vmem:[%s2 + $0x30] sm:$0xff]
    %v59 = vld [vmem:[%s2 + $0x38] sm:$0xff]
    %v60 = vld [vmem:[%s2 + $0x40] sm:$0xff]
    %v61 = vld [vmem:[%s2 + $0x48] sm:$0xff]
    %v62 = vld [vmem:[%s2 + $0x50] sm:$0xff]
    %v63 = vld [vmem:[%s2 + $0x58] sm:$0xff]
    %v64 = vld [vmem:[%s2 + $0x60] sm:$0xff]
    %v65 = vld [vmem:[%s2 + $0x68] sm:$0xff]
    %v66 = vld [vmem:[%s2 + $0x70] sm:$0xff]
    %v67 = vld [vmem:[%s2 + $0x78] sm:$0xff]
    %v68 = vsub.f32 %v36, %v52
    %v69 = vsub.f32 %v37, %v53
    %v70 = vsub.f32 %v38, %v54
    %v71 = vsub.f32 %v39, %v55
    %v72 = vsub.f32 %v40, %v56
    %v73 = vsub.f32 %v41, %v57
    %v74 = vsub.f32 %v42, %v58
    %v75 = vsub.f32 %v43, %v59
    %v76 = vsub.f32 %v44, %v60
    %v77 = vsub.f32 %v45, %v61
    %v78 = vsub.f32 %v46, %v62
    %v79 = vsub.f32 %v47, %v63
    %v80 = vsub.f32 %v48, %v64
    %v81 = vsub.f32 %v49, %v65
    %v82 = vsub.f32 %v50, %v66
    %v83 = vsub.f32 %v51, %v67
    %v84 = vmul.f32 %v20, %v68
    %v85 = vmul.f32 %v21, %v69
    %v86 = vmul.f32 %v22, %v70
    %v87 = vmul.f32 %v23, %v71
    %v88 = vmul.f32 %v24, %v72
    %v89 = vmul.f32 %v25, %v73
    %v90 = vmul.f32 %v26, %v74
    %v91 = vmul.f32 %v27, %v75
    %v92 = vmul.f32 %v28, %v76
    %v93 = vmul.f32 %v29, %v77
    %v94 = vmul.f32 %v30, %v78
    %v95 = vmul.f32 %v31, %v79
    %v96 = vmul.f32 %v32, %v80
    %v97 = vmul.f32 %v33, %v81
    %v98 = vmul.f32 %v34, %v82
    %v99 = vmul.f32 %v35, %v83
    %vm100 = vcmask 261120
    %v101 = vsel %vm100, %v84, 0.0
    %102 = vadd.xlane.f32.xlu0 %v101
    %v103 = vpop.xlane.xlu0 %102
    %v104 = vsel %vm100, %v85, 0.0
    %105 = vadd.xlane.f32.xlu0 %v104
    %v106 = vpop.xlane.xlu0 %105
    %v107 = vsel %vm100, %v86, 0.0
    %108 = vadd.xlane.f32.xlu0 %v107
    %v109 = vpop.xlane.xlu0 %108
    %v110 = vsel %vm100, %v87, 0.0
    %111 = vadd.xlane.f32.xlu0 %v110
    %v112 = vpop.xlane.xlu0 %111
    %v113 = vsel %vm100, %v88, 0.0
    %114 = vadd.xlane.f32.xlu0 %v113
    %v115 = vpop.xlane.xlu0 %114
    %v116 = vsel %vm100, %v89, 0.0
    %117 = vadd.xlane.f32.xlu0 %v116
    %v118 = vpop.xlane.xlu0 %117
    %v119 = vsel %vm100, %v90, 0.0
    %120 = vadd.xlane.f32.xlu0 %v119
    %v121 = vpop.xlane.xlu0 %120
    %v122 = vsel %vm100, %v91, 0.0
    %123 = vadd.xlane.f32.xlu0 %v122
    %v124 = vpop.xlane.xlu0 %123
    %v125 = vsel %vm100, %v92, 0.0
    %126 = vadd.xlane.f32.xlu0 %v125
    %v127 = vpop.xlane.xlu0 %126
    %v128 = vsel %vm100, %v93, 0.0
    %129 = vadd.xlane.f32.xlu0 %v128
    %v130 = vpop.xlane.xlu0 %129
    %v131 = vsel %vm100, %v94, 0.0
    %132 = vadd.xlane.f32.xlu0 %v131
    %v133 = vpop.xlane.xlu0 %132
    %v134 = vsel %vm100, %v95, 0.0
    %135 = vadd.xlane.f32.xlu0 %v134
    %v136 = vpop.xlane.xlu0 %135
    %v137 = vsel %vm100, %v96, 0.0
    %138 = vadd.xlane.f32.xlu0 %v137
    %v139 = vpop.xlane.xlu0 %138
    %v140 = vsel %vm100, %v97, 0.0
    %141 = vadd.xlane.f32.xlu0 %v140
    %v142 = vpop.xlane.xlu0 %141
    %v143 = vsel %vm100, %v98, 0.0
    %144 = vadd.xlane.f32.xlu0 %v143
    %v145 = vpop.xlane.xlu0 %144
    %v146 = vsel %vm100, %v99, 0.0
    %147 = vadd.xlane.f32.xlu0 %v146
    %v148 = vpop.xlane.xlu0 %147
    %v149 = vmul.f32 %v103, 10.0
    %v150 = vmul.f32 %v106, 10.0
    %v151 = vmul.f32 %v109, 10.0
    %v152 = vmul.f32 %v112, 10.0
    %v153 = vmul.f32 %v115, 10.0
    %v154 = vmul.f32 %v118, 10.0
    %v155 = vmul.f32 %v121, 10.0
    %v156 = vmul.f32 %v124, 10.0
    %v157 = vmul.f32 %v127, 10.0
    %v158 = vmul.f32 %v130, 10.0
    %v159 = vmul.f32 %v133, 10.0
    %v160 = vmul.f32 %v136, 10.0
    %v161 = vmul.f32 %v139, 10.0
    %v162 = vmul.f32 %v142, 10.0
    %v163 = vmul.f32 %v145, 10.0
    %v164 = vmul.f32 %v148, 10.0
    %v165 = vmin.f32 %v149, 0.0
    %v166 = vmin.f32 %v150, 0.0
    %v167 = vmin.f32 %v151, 0.0
    %v168 = vmin.f32 %v152, 0.0
    %v169 = vmin.f32 %v153, 0.0
    %v170 = vmin.f32 %v154, 0.0
    %v171 = vmin.f32 %v155, 0.0
    %v172 = vmin.f32 %v156, 0.0
    %v173 = vmin.f32 %v157, 0.0
    %v174 = vmin.f32 %v158, 0.0
    %v175 = vmin.f32 %v159, 0.0
    %v176 = vmin.f32 %v160, 0.0
    %v177 = vmin.f32 %v161, 0.0
    %v178 = vmin.f32 %v162, 0.0
    %v179 = vmin.f32 %v163, 0.0
    %v180 = vmin.f32 %v164, 0.0
    %v181 = vand.u32 2147483647, %v149
    %v182 = vand.u32 2147483647, %v150
    %v183 = vand.u32 2147483647, %v151
    %v184 = vand.u32 2147483647, %v152
    %v185 = vand.u32 2147483647, %v153
    %v186 = vand.u32 2147483647, %v154
    %v187 = vand.u32 2147483647, %v155
    %v188 = vand.u32 2147483647, %v156
    %v189 = vand.u32 2147483647, %v157
    %v190 = vand.u32 2147483647, %v158
    %v191 = vand.u32 2147483647, %v159
    %v192 = vand.u32 2147483647, %v160
    %v193 = vand.u32 2147483647, %v161
    %v194 = vand.u32 2147483647, %v162
    %v195 = vand.u32 2147483647, %v163
    %v196 = vand.u32 2147483647, %v164
    %v197 = vsub.f32 0.0, %v181
    %v198 = vsub.f32 0.0, %v182
    %v199 = vsub.f32 0.0, %v183
    %v200 = vsub.f32 0.0, %v184
    %v201 = vsub.f32 0.0, %v185
    %v202 = vsub.f32 0.0, %v186
    %v203 = vsub.f32 0.0, %v187
    %v204 = vsub.f32 0.0, %v188
    %v205 = vsub.f32 0.0, %v189
    %v206 = vsub.f32 0.0, %v190
    %v207 = vsub.f32 0.0, %v191
    %v208 = vsub.f32 0.0, %v192
    %v209 = vsub.f32 0.0, %v193
    %v210 = vsub.f32 0.0, %v194
    %v211 = vsub.f32 0.0, %v195
    %v212 = vsub.f32 0.0, %v196
    %v213 = vmul.f32 %v197, 1.442695
    %v214 = vpow.pop %v213
    %v215 = vmul.f32 %v198, 1.442695
    %v216 = vpow.pop %v215
    %v217 = vmul.f32 %v199, 1.442695
    %v218 = vpow.pop %v217
    %v219 = vmul.f32 %v200, 1.442695
    %v220 = vpow.pop %v219
    %v221 = vmul.f32 %v201, 1.442695
    %v222 = vpow.pop %v221
    %v223 = vmul.f32 %v202, 1.442695
    %v224 = vpow.pop %v223
    %v225 = vmul.f32 %v203, 1.442695
    %v226 = vpow.pop %v225
    %v227 = vmul.f32 %v204, 1.442695
    %v228 = vpow.pop %v227
    %v229 = vmul.f32 %v205, 1.442695
    %v230 = vpow.pop %v229
    %v231 = vmul.f32 %v206, 1.442695
    %v232 = vpow.pop %v231
    %v233 = vmul.f32 %v207, 1.442695
    %v234 = vpow.pop %v233
    %v235 = vmul.f32 %v208, 1.442695
    %v236 = vpow.pop %v235
    %v237 = vmul.f32 %v209, 1.442695
    %v238 = vpow.pop %v237
    %v239 = vmul.f32 %v210, 1.442695
    %v240 = vpow.pop %v239
    %v241 = vmul.f32 %v211, 1.442695
    %v242 = vpow.pop %v241
    %v243 = vmul.f32 %v212, 1.442695
    %v244 = vpow.pop %v243
    %v245 = vadd.f32 %v214, 1.0
    %v246 = vadd.f32 %v216, 1.0
    %v247 = vadd.f32 %v218, 1.0
    %v248 = vadd.f32 %v220, 1.0
    %v249 = vadd.f32 %v222, 1.0
    %v250 = vadd.f32 %v224, 1.0
    %v251 = vadd.f32 %v226, 1.0
    %v252 = vadd.f32 %v228, 1.0
    %v253 = vadd.f32 %v230, 1.0
    %v254 = vadd.f32 %v232, 1.0
    %v255 = vadd.f32 %v234, 1.0
    %v256 = vadd.f32 %v236, 1.0
    %v257 = vadd.f32 %v238, 1.0
    %v258 = vadd.f32 %v240, 1.0
    %v259 = vadd.f32 %v242, 1.0
    %v260 = vadd.f32 %v244, 1.0
    %v261 = vlog2.pop %v245
    %v262 = vmul.f32 %v261, 0.6931472
    %v263 = vlog2.pop %v246
    %v264 = vmul.f32 %v263, 0.6931472
    %v265 = vlog2.pop %v247
    %v266 = vmul.f32 %v265, 0.6931472
    %v267 = vlog2.pop %v248
    %v268 = vmul.f32 %v267, 0.6931472
    %v269 = vlog2.pop %v249
    %v270 = vmul.f32 %v269, 0.6931472
    %v271 = vlog2.pop %v250
    %v272 = vmul.f32 %v271, 0.6931472
    %v273 = vlog2.pop %v251
    %v274 = vmul.f32 %v273, 0.6931472
    %v275 = vlog2.pop %v252
    %v276 = vmul.f32 %v275, 0.6931472
    %v277 = vlog2.pop %v253
    %v278 = vmul.f32 %v277, 0.6931472
    %v279 = vlog2.pop %v254
    %v280 = vmul.f32 %v279, 0.6931472
    %v281 = vlog2.pop %v255
    %v282 = vmul.f32 %v281, 0.6931472
    %v283 = vlog2.pop %v256
    %v284 = vmul.f32 %v283, 0.6931472
    %v285 = vlog2.pop %v257
    %v286 = vmul.f32 %v285, 0.6931472
    %v287 = vlog2.pop %v258
    %v288 = vmul.f32 %v287, 0.6931472
    %v289 = vlog2.pop %v259
    %v290 = vmul.f32 %v289, 0.6931472
    %v291 = vlog2.pop %v260
    %v292 = vmul.f32 %v291, 0.6931472
    %v293 = vsub.f32 %v165, %v262
    %v294 = vsub.f32 %v166, %v264
    %v295 = vsub.f32 %v167, %v266
    %v296 = vsub.f32 %v168, %v268
    %v297 = vsub.f32 %v169, %v270
    %v298 = vsub.f32 %v170, %v272
    %v299 = vsub.f32 %v171, %v274
    %v300 = vsub.f32 %v172, %v276
    %v301 = vsub.f32 %v173, %v278
    %v302 = vsub.f32 %v174, %v280
    %v303 = vsub.f32 %v175, %v282
    %v304 = vsub.f32 %v176, %v284
    %v305 = vsub.f32 %v177, %v286
    %v306 = vsub.f32 %v178, %v288
    %v307 = vsub.f32 %v179, %v290
    %v308 = vsub.f32 %v180, %v292
    %v309 = vmul.f32 %v293, 1.442695
    %v310 = vmul.f32 %v294, 1.442695
    %v311 = vmul.f32 %v295, 1.442695
    %v312 = vmul.f32 %v296, 1.442695
    %v313 = vmul.f32 %v297, 1.442695
    %v314 = vmul.f32 %v298, 1.442695
    %v315 = vmul.f32 %v299, 1.442695
    %v316 = vmul.f32 %v300, 1.442695
    %v317 = vmul.f32 %v301, 1.442695
    %v318 = vmul.f32 %v302, 1.442695
    %v319 = vmul.f32 %v303, 1.442695
    %v320 = vmul.f32 %v304, 1.442695
    %v321 = vmul.f32 %v305, 1.442695
    %v322 = vmul.f32 %v306, 1.442695
    %v323 = vmul.f32 %v307, 1.442695
    %v324 = vmul.f32 %v308, 1.442695
    %v325 = vlaneseq
    %v326 = vshrl.u32 %v325, 7
    %v327 = vlaneseq
    %v328 = vand.u32 %v327, 127
    %v329 = vstv 0
    %v330 = vadd.s32 %v329, %v326
    %v331 = vmul.u32 %v330, 128
    %v332 = vadd.s32 %v331, %v328
    %vm333 = vcmp.lt.s32.totalorder %v332, 16
    %v334 = vld [vmem:[#allocation2] sm:$0x1]
    %v351 = vlaneseq
    %v352 = vshrl.u32 %v351, 7
    %v353 = vsub.s32 %v328, %v352
    %v354 = vrot.slane %v309, %v353
    %v355 = vadd.s32 %v328, 4294967288
    %v356 = vlaneseq
    %v357 = vshrl.u32 %v356, 7
    %v358 = vsub.s32 %v355, %v357
    %v359 = vrot.slane %v310, %v358
    %vm360 = vcmask 130112
    %v361 = vsel %vm360, %v359, %v354
    %v362 = vadd.s32 %v328, 4294967280
    %v363 = vlaneseq
    %v364 = vshrl.u32 %v363, 7
    %v365 = vsub.s32 %v362, %v364
    %v366 = vrot.slane %v311, %v365
    %vm367 = vcmask 195712
    %v368 = vsel %vm367, %v366, %v361
    %v369 = vadd.s32 %v328, 4294967272
    %v370 = vlaneseq
    %v371 = vshrl.u32 %v370, 7
    %v372 = vsub.s32 %v369, %v371
    %v373 = vrot.slane %v312, %v372
    %vm374 = vcmask 261312
    %v375 = vsel %vm374, %v373, %v368
    %v376 = vadd.s32 %v328, 4294967264
    %v377 = vlaneseq
    %v378 = vshrl.u32 %v377, 7
    %v379 = vsub.s32 %v376, %v378
    %v380 = vrot.slane %v313, %v379
    %vm381 = vcmask 326912
    %v382 = vsel %vm381, %v380, %v375
    %v383 = vadd.s32 %v328, 4294967256
    %v384 = vlaneseq
    %v385 = vshrl.u32 %v384, 7
    %v386 = vsub.s32 %v383, %v385
    %v387 = vrot.slane %v314, %v386
    %vm388 = vcmask 392512
    %v389 = vsel %vm388, %v387, %v382
    %v390 = vadd.s32 %v328, 4294967248
    %v391 = vlaneseq
    %v392 = vshrl.u32 %v391, 7
    %v393 = vsub.s32 %v390, %v392
    %v394 = vrot.slane %v315, %v393
    %vm395 = vcmask 458112
    %v396 = vsel %vm395, %v394, %v389
    %v397 = vadd.s32 %v328, 4294967240
    %v398 = vlaneseq
    %v399 = vshrl.u32 %v398, 7
    %v400 = vsub.s32 %v397, %v399
    %v401 = vrot.slane %v316, %v400
    %vm402 = vcmask 523712
    %v403 = vsel %vm402, %v401, %v396
    %v404 = vadd.s32 %v328, 4294967232
    %v405 = vlaneseq
    %v406 = vshrl.u32 %v405, 7
    %v407 = vsub.s32 %v404, %v406
    %v408 = vrot.slane %v317, %v407
    %vm409 = vcmask 589312
    %v410 = vsel %vm409, %v408, %v403
    %v411 = vadd.s32 %v328, 4294967224
    %v412 = vlaneseq
    %v413 = vshrl.u32 %v412, 7
    %v414 = vsub.s32 %v411, %v413
    %v415 = vrot.slane %v318, %v414
    %vm416 = vcmask 654912
    %v417 = vsel %vm416, %v415, %v410
    %v418 = vadd.s32 %v328, 4294967216
    %v419 = vlaneseq
    %v420 = vshrl.u32 %v419, 7
    %v421 = vsub.s32 %v418, %v420
    %v422 = vrot.slane %v319, %v421
    %vm423 = vcmask 720512
    %v424 = vsel %vm423, %v422, %v417
    %v425 = vadd.s32 %v328, 4294967208
    %v426 = vlaneseq
    %v427 = vshrl.u32 %v426, 7
    %v428 = vsub.s32 %v425, %v427
    %v429 = vrot.slane %v320, %v428
    %vm430 = vcmask 786112
    %v431 = vsel %vm430, %v429, %v424
    %v432 = vadd.s32 %v328, 4294967200
    %v433 = vlaneseq
    %v434 = vshrl.u32 %v433, 7
    %v435 = vsub.s32 %v432, %v434
    %v436 = vrot.slane %v321, %v435
    %vm437 = vcmask 851712
    %v438 = vsel %vm437, %v436, %v431
    %v439 = vadd.s32 %v328, 4294967192
    %v440 = vlaneseq
    %v441 = vshrl.u32 %v440, 7
    %v442 = vsub.s32 %v439, %v441
    %v443 = vrot.slane %v322, %v442
    %vm444 = vcmask 917312
    %v445 = vsel %vm444, %v443, %v438
    %v446 = vadd.s32 %v328, 4294967184
    %v447 = vlaneseq
    %v448 = vshrl.u32 %v447, 7
    %v449 = vsub.s32 %v446, %v448
    %v450 = vrot.slane %v323, %v449
    %vm451 = vcmask 982912
    %v452 = vsel %vm451, %v450, %v445
    %v453 = vadd.s32 %v328, 4294967176
    %v454 = vlaneseq
    %v455 = vshrl.u32 %v454, 7
    %v456 = vsub.s32 %v453, %v455
    %v457 = vrot.slane %v324, %v456
    %vm458 = vcmask 1048512
    %v459 = vsel %vm458, %v457, %v452
    %v461 = vsel %vm333, %v459, 0.0
    %v462 = vadd.f32 %v334, %v461
    %463 = vst [vmem:[#allocation2] sm:$0x1] %v462
    // Predicated region
    $region18: #{tpu_custom_call.1} parent=1 // pred_check
      %p464 = pneg %p15
    $region19: #{tpu_custom_call.1} parent=1 // pred_check_branch
      %466 = sbr.rel (%p464) target = $region21
    $region20: #{tpu_custom_call.1} parent=1 // pred_region
      %v467 = vld [vmem:[#allocation2] sm:$0x1]
      %vm468 = vcmask 1040384
      %v469 = vsel %vm468, %v467, 0.0
      %470 = vadd.xlane.f32.xlu0 %v469
      %v471 = vpop.xlane.xlu0 %470
      %v472 = vrot.slane %v471, 4
      %v473 = vadd.f32 %v471, %v472
      %v474 = vrot.slane %v473, 2
      %v475 = vadd.f32 %v473, %v474
      %v476 = vrot.slane %v475, 1
      %v477 = vadd.f32 %v475, %v476
      %s478 = vtos %v477
      %v479 = vstv %s478
      %vm480 = vcmask 0
      %481 = vst.msk [vmem:[#allocation3] sm:$0x1] %vm480, %v479
    $region21: #{tpu_custom_call.1} parent=1 // pred_fallthru
      _
    // Predicated region
    $region22: #{tpu_custom_call.1} parent=1 // pred_check
      _
    $region23: #{tpu_custom_call.1} parent=1 // pred_check_branch
      %483 = sbr.rel (0) target = $region25
    $region24: #{tpu_custom_call.1} parent=1 // pred_region
      %s485 = ssub.s32 16, 16
      %486 = vsyncadd [#allocation4], %s485
      %s488 = sshll.u32 [#allocation3], 4
      %s489 = int_to_ptr.vmem [resolvable:$true] %s488
      %491 = dma.vmem_to_hbm [thread:$0]  %s489, 16, %s3, [#allocation4]
    $region25: #{tpu_custom_call.1} parent=1 // pred_fallthru
      _
    // Predicated region
    $region26: #{tpu_custom_call.1} parent=1 // pred_check
      _
    $region27: #{tpu_custom_call.1} parent=1 // pred_check_branch
      %493 = sbr.rel (0) target = $region29
    $region28: #{tpu_custom_call.1} parent=1 // pred_region
      %494 = dma.done [#allocation4], 16
    $region29: #{tpu_custom_call.1} parent=1 // pred_fallthru
      _
    %495 = vsyncpa [#allocation4], 1

</llo_original>
